<compile_context>
chip_gen: v7x
topology: tpu7x:2x2x1
jax: 0.10.0
libtpu: 0.0.40
codegen_flags: <defaults>
</compile_context>

<pallas_src>
import math

import jax
import jax.numpy as jnp
from jax import lax
from jax.experimental import pallas as pl
from jax.experimental.pallas import tpu as pltpu

MAX_TOK_BLOCK = 256   # max tokens per grid step
_SUBLANE = 8
_UNROLL = 8


def _make_embedding_kernel(scale, tok_block, use_fori_loop):
    def kernel(ids_ref, table_ref, out_ref):
        # ids_ref   : SMEM (padded_tokens,) int32   -- scalar-prefetched indices
        # table_ref : VMEM (vocab, d_model)
        # out_ref   : VMEM (tok_block, d_model)
        base = pl.program_id(0) * tok_block

        if use_fori_loop:
            def body(t, carry):
                row = ids_ref[base + t]
                out_ref[t, :] = table_ref[row, :] * scale
                return carry

            lax.fori_loop(0, tok_block, body, 0, unroll=_UNROLL)
        else:
            # Fallback: fully static unroll (always lowers; bigger instruction stream).
            for t in range(tok_block):
                row = ids_ref[base + t]
                out_ref[t, :] = table_ref[row, :] * scale

    return kernel


def _run_pallas(ids_flat, table, scale, tok_block, single_buffer_table, use_fori_loop):
    vocab, d_model = table.shape
    padded = ids_flat.shape[0]
    n_blocks = padded // tok_block

    if single_buffer_table:
        # Constant block index -> double-buffering the table only wastes VMEM.
        table_spec = pl.BlockSpec((vocab, d_model), lambda i, ids: (0, 0),
                                  pipeline_mode=pl.Buffered(1))
        n_table_buffers = 1
    else:
        table_spec = pl.BlockSpec((vocab, d_model), lambda i, ids: (0, 0))
        n_table_buffers = 2

    itemsize = jnp.dtype(table.dtype).itemsize
    vmem_need = (n_table_buffers * vocab * d_model * itemsize
                 + 2 * tok_block * d_model * itemsize
                 + (1 << 20))
    # Cap at 64 MiB (safe on v5e/v6e/v7x physical VMEM).
    vmem_limit = int(min(64 * 2 ** 20, max(8 * 2 ** 20, vmem_need)))

    grid_spec = pltpu.PrefetchScalarGridSpec(
        num_scalar_prefetch=1,
        grid=(n_blocks,),
        in_specs=[table_spec],
        out_specs=pl.BlockSpec((tok_block, d_model), lambda i, ids: (i, 0)),
    )

    return pl.pallas_call(
        _make_embedding_kernel(scale, tok_block, use_fori_loop),
        out_shape=jax.ShapeDtypeStruct((padded, d_model), table.dtype),
        grid_spec=grid_spec,
        compiler_params=pltpu.CompilerParams(
            dimension_semantics=("parallel",),
            vmem_limit_bytes=vmem_limit,
        ),
    )(ids_flat, table)


def embeddings_forward(ids, table, *, scale_embedding=True):
    """Pallas equivalent of Embeddings.forward (nn.Embedding lookup + sqrt(d_model) scale)."""
    vocab, d_model = table.shape
    scale = float(math.sqrt(d_model)) if scale_embedding else 1.0

    B, S = ids.shape
    num_tokens = B * S

    if num_tokens >= MAX_TOK_BLOCK:
        tok_block = MAX_TOK_BLOCK
    else:
        tok_block = max(_SUBLANE, ((num_tokens + _SUBLANE - 1) // _SUBLANE) * _SUBLANE)
    padded = pl.cdiv(num_tokens, tok_block) * tok_block

    # Clamp ids: VMEM reads are not bounds-checked on TPU (nn.Embedding would error).
    ids_flat = jnp.clip(ids.reshape(num_tokens).astype(jnp.int32), 0, vocab - 1)
    if padded != num_tokens:
        ids_flat = jnp.concatenate(
            [ids_flat, jnp.zeros((padded - num_tokens,), jnp.int32)])

    # Try the most optimized configuration first; degrade gracefully if the
    # installed Pallas build rejects a feature (e.g. Buffered(1), or dynamic-row
    # stores inside fori_loop).
    attempts = (
        (True, True),    # single-buffered table + fori_loop gather
        (False, True),   # double-buffered table + fori_loop gather
        (False, False),  # double-buffered table + static unrolled gather
    )
    out_flat = None
    last_err = None
    for single_buf, fori in attempts:
        try:
            out_flat = _run_pallas(ids_flat, table, scale, tok_block, single_buf, fori)
            break
        except Exception as e:  # feature-availability fallback
            last_err = e
    if out_flat is None:
        raise last_err

    return out_flat[:num_tokens].reshape(B, S, d_model)


def init_embedding_weight(key, vocab, d_model, padding_idx=None):
    # nn.init.normal_(weight, mean=0.0, std=d_model ** -0.5)
    w = jax.random.normal(key, (vocab, d_model), jnp.float32) * (d_model ** -0.5)
    if padding_idx is not None:
        # nn.Embedding zeroes the padding_idx row at init.
        w = w.at[padding_idx].set(0.0)
    return w


if __name__ == "__main__":
    key = jax.random.PRNGKey(0)
    k_w, k_ids = jax.random.split(key)

    # Small shapes consistent with the module: batch=2, seq=8, vocab=64, d_model=32.
    vocab, d_model = 64, 32
    B, S = 2, 8

    table = init_embedding_weight(k_w, vocab, d_model, padding_idx=None)
    ids = jax.random.randint(k_ids, (B, S), 0, vocab, dtype=jnp.int32)

    out = embeddings_forward(ids, table, scale_embedding=True)
    out = jax.block_until_ready(out)

    # Sanity check against plain-JAX reference.
    ref = jnp.take(table, ids, axis=0) * math.sqrt(d_model)
    assert out.shape == (B, S, d_model)
    assert jnp.allclose(out, ref, atol=1e-5, rtol=1e-5)

    print("KERNEL_OK")
</pallas_src>

<mosaic_0001>
module attributes {stable_mosaic.version = 11 : i64} {
  func.func @kernel(%arg0: i32, %arg1: memref<16xi32, #tpu.memory_space<smem>>, %arg2: memref<64x32xf32, #tpu.memory_space<vmem>>, %arg3: memref<16x32xf32, #tpu.memory_space<vmem>>) attributes {dimension_semantics = [#tpu.dimension_semantics<parallel>], iteration_bounds = array<i64: 1>, scalar_prefetch = 1 : i64, scratch_operands = 0 : i64, tpu.core_type = #tpu.core_type<tc>, window_params = [{pipeline_mode = #tpu.pipeline_mode<synchronous>, transform_indices = @transform_0, window_bounds = array<i64: 64, 32>}, {transform_indices = @transform_1, window_bounds = array<i64: 16, 32>}]} {
    %c16_i32 = arith.constant 16 : i32
    %0 = arith.muli %arg0, %c16_i32 : i32
    %c0_i32 = arith.constant 0 : i32
    %1 = arith.addi %0, %c0_i32 : i32
    %2 = arith.index_cast %1 : i32 to index
    %3 = memref.load %arg1[%2] : memref<16xi32, #tpu.memory_space<smem>>
    %4 = arith.index_cast %3 : i32 to index
    %c0 = arith.constant 0 : index
    %5 = vector.load %arg2[%4, %c0] : memref<64x32xf32, #tpu.memory_space<vmem>>, vector<1x32xf32>
    %6 = vector.shape_cast %5 : vector<1x32xf32> to vector<32xf32>
    %cst = arith.constant 5.65685415 : f32
    %7 = vector.broadcast %cst : f32 to vector<32xf32>
    %8 = arith.mulf %6, %7 : vector<32xf32>
    %c0_0 = arith.constant 0 : index
    %c0_1 = arith.constant 0 : index
    %9 = vector.load %arg3[%c0_0, %c0_1] : memref<16x32xf32, #tpu.memory_space<vmem>>, vector<1x32xf32>
    %10 = vector.shape_cast %9 : vector<1x32xf32> to vector<32xf32>
    %11 = vector.shape_cast %8 : vector<32xf32> to vector<1x32xf32>
    tpu.vector_store %arg3[%c0_0, %c0_1], %11 {strides = array<i32>} : memref<16x32xf32, #tpu.memory_space<vmem>>, vector<1x32xf32>,
    %c1_i32 = arith.constant 1 : i32
    %12 = arith.addi %0, %c1_i32 : i32
    %13 = arith.index_cast %12 : i32 to index
    %14 = memref.load %arg1[%13] : memref<16xi32, #tpu.memory_space<smem>>
    %15 = arith.index_cast %14 : i32 to index
    %c0_2 = arith.constant 0 : index
    %16 = vector.load %arg2[%15, %c0_2] : memref<64x32xf32, #tpu.memory_space<vmem>>, vector<1x32xf32>
    %17 = vector.shape_cast %16 : vector<1x32xf32> to vector<32xf32>
    %cst_3 = arith.constant 5.65685415 : f32
    %18 = vector.broadcast %cst_3 : f32 to vector<32xf32>
    %19 = arith.mulf %17, %18 : vector<32xf32>
    %c1 = arith.constant 1 : index
    %c0_4 = arith.constant 0 : index
    %20 = vector.load %arg3[%c1, %c0_4] : memref<16x32xf32, #tpu.memory_space<vmem>>, vector<1x32xf32>
    %21 = vector.shape_cast %20 : vector<1x32xf32> to vector<32xf32>
    %22 = vector.shape_cast %19 : vector<32xf32> to vector<1x32xf32>
    tpu.vector_store %arg3[%c1, %c0_4], %22 {strides = array<i32>} : memref<16x32xf32, #tpu.memory_space<vmem>>, vector<1x32xf32>,
    %c2_i32 = arith.constant 2 : i32
    %23 = arith.addi %0, %c2_i32 : i32
    %24 = arith.index_cast %23 : i32 to index
    %25 = memref.load %arg1[%24] : memref<16xi32, #tpu.memory_space<smem>>
    %26 = arith.index_cast %25 : i32 to index
    %c0_5 = arith.constant 0 : index
    %27 = vector.load %arg2[%26, %c0_5] : memref<64x32xf32, #tpu.memory_space<vmem>>, vector<1x32xf32>
    %28 = vector.shape_cast %27 : vector<1x32xf32> to vector<32xf32>
    %cst_6 = arith.constant 5.65685415 : f32
    %29 = vector.broadcast %cst_6 : f32 to vector<32xf32>
    %30 = arith.mulf %28, %29 : vector<32xf32>
    %c2 = arith.constant 2 : index
    %c0_7 = arith.constant 0 : index
    %31 = vector.load %arg3[%c2, %c0_7] : memref<16x32xf32, #tpu.memory_space<vmem>>, vector<1x32xf32>
    %32 = vector.shape_cast %31 : vector<1x32xf32> to vector<32xf32>
    %33 = vector.shape_cast %30 : vector<32xf32> to vector<1x32xf32>
    tpu.vector_store %arg3[%c2, %c0_7], %33 {strides = array<i32>} : memref<16x32xf32, #tpu.memory_space<vmem>>, vector<1x32xf32>,
    %c3_i32 = arith.constant 3 : i32
    %34 = arith.addi %0, %c3_i32 : i32
    %35 = arith.index_cast %34 : i32 to index
    %36 = memref.load %arg1[%35] : memref<16xi32, #tpu.memory_space<smem>>
    %37 = arith.index_cast %36 : i32 to index
    %c0_8 = arith.constant 0 : index
    %38 = vector.load %arg2[%37, %c0_8] : memref<64x32xf32, #tpu.memory_space<vmem>>, vector<1x32xf32>
    %39 = vector.shape_cast %38 : vector<1x32xf32> to vector<32xf32>
    %cst_9 = arith.constant 5.65685415 : f32
    %40 = vector.broadcast %cst_9 : f32 to vector<32xf32>
    %41 = arith.mulf %39, %40 : vector<32xf32>
    %c3 = arith.constant 3 : index
    %c0_10 = arith.constant 0 : index
    %42 = vector.load %arg3[%c3, %c0_10] : memref<16x32xf32, #tpu.memory_space<vmem>>, vector<1x32xf32>
    %43 = vector.shape_cast %42 : vector<1x32xf32> to vector<32xf32>
    %44 = vector.shape_cast %41 : vector<32xf32> to vector<1x32xf32>
    tpu.vector_store %arg3[%c3, %c0_10], %44 {strides = array<i32>} : memref<16x32xf32, #tpu.memory_space<vmem>>, vector<1x32xf32>,
    %c4_i32 = arith.constant 4 : i32
    %45 = arith.addi %0, %c4_i32 : i32
    %46 = arith.index_cast %45 : i32 to index
    %47 = memref.load %arg1[%46] : memref<16xi32, #tpu.memory_space<smem>>
    %48 = arith.index_cast %47 : i32 to index
    %c0_11 = arith.constant 0 : index
    %49 = vector.load %arg2[%48, %c0_11] : memref<64x32xf32, #tpu.memory_space<vmem>>, vector<1x32xf32>
    %50 = vector.shape_cast %49 : vector<1x32xf32> to vector<32xf32>
    %cst_12 = arith.constant 5.65685415 : f32
    %51 = vector.broadcast %cst_12 : f32 to vector<32xf32>
    %52 = arith.mulf %50, %51 : vector<32xf32>
    %c4 = arith.constant 4 : index
    %c0_13 = arith.constant 0 : index
    %53 = vector.load %arg3[%c4, %c0_13] : memref<16x32xf32, #tpu.memory_space<vmem>>, vector<1x32xf32>
    %54 = vector.shape_cast %53 : vector<1x32xf32> to vector<32xf32>
    %55 = vector.shape_cast %52 : vector<32xf32> to vector<1x32xf32>
    tpu.vector_store %arg3[%c4, %c0_13], %55 {strides = array<i32>} : memref<16x32xf32, #tpu.memory_space<vmem>>, vector<1x32xf32>,
    %c5_i32 = arith.constant 5 : i32
    %56 = arith.addi %0, %c5_i32 : i32
    %57 = arith.index_cast %56 : i32 to index
    %58 = memref.load %arg1[%57] : memref<16xi32, #tpu.memory_space<smem>>
    %59 = arith.index_cast %58 : i32 to index
    %c0_14 = arith.constant 0 : index
    %60 = vector.load %arg2[%59, %c0_14] : memref<64x32xf32, #tpu.memory_space<vmem>>, vector<1x32xf32>
    %61 = vector.shape_cast %60 : vector<1x32xf32> to vector<32xf32>
    %cst_15 = arith.constant 5.65685415 : f32
    %62 = vector.broadcast %cst_15 : f32 to vector<32xf32>
    %63 = arith.mulf %61, %62 : vector<32xf32>
    %c5 = arith.constant 5 : index
    %c0_16 = arith.constant 0 : index
    %64 = vector.load %arg3[%c5, %c0_16] : memref<16x32xf32, #tpu.memory_space<vmem>>, vector<1x32xf32>
    %65 = vector.shape_cast %64 : vector<1x32xf32> to vector<32xf32>
    %66 = vector.shape_cast %63 : vector<32xf32> to vector<1x32xf32>
    tpu.vector_store %arg3[%c5, %c0_16], %66 {strides = array<i32>} : memref<16x32xf32, #tpu.memory_space<vmem>>, vector<1x32xf32>,
    %c6_i32 = arith.constant 6 : i32
    %67 = arith.addi %0, %c6_i32 : i32
    %68 = arith.index_cast %67 : i32 to index
    %69 = memref.load %arg1[%68] : memref<16xi32, #tpu.memory_space<smem>>
    %70 = arith.index_cast %69 : i32 to index
    %c0_17 = arith.constant 0 : index
    %71 = vector.load %arg2[%70, %c0_17] : memref<64x32xf32, #tpu.memory_space<vmem>>, vector<1x32xf32>
    %72 = vector.shape_cast %71 : vector<1x32xf32> to vector<32xf32>
    %cst_18 = arith.constant 5.65685415 : f32
    %73 = vector.broadcast %cst_18 : f32 to vector<32xf32>
    %74 = arith.mulf %72, %73 : vector<32xf32>
    %c6 = arith.constant 6 : index
    %c0_19 = arith.constant 0 : index
    %75 = vector.load %arg3[%c6, %c0_19] : memref<16x32xf32, #tpu.memory_space<vmem>>, vector<1x32xf32>
    %76 = vector.shape_cast %75 : vector<1x32xf32> to vector<32xf32>
    %77 = vector.shape_cast %74 : vector<32xf32> to vector<1x32xf32>
    tpu.vector_store %arg3[%c6, %c0_19], %77 {strides = array<i32>} : memref<16x32xf32, #tpu.memory_space<vmem>>, vector<1x32xf32>,
    %c7_i32 = arith.constant 7 : i32
    %78 = arith.addi %0, %c7_i32 : i32
    %79 = arith.index_cast %78 : i32 to index
    %80 = memref.load %arg1[%79] : memref<16xi32, #tpu.memory_space<smem>>
    %81 = arith.index_cast %80 : i32 to index
    %c0_20 = arith.constant 0 : index
    %82 = vector.load %arg2[%81, %c0_20] : memref<64x32xf32, #tpu.memory_space<vmem>>, vector<1x32xf32>
    %83 = vector.shape_cast %82 : vector<1x32xf32> to vector<32xf32>
    %cst_21 = arith.constant 5.65685415 : f32
    %84 = vector.broadcast %cst_21 : f32 to vector<32xf32>
    %85 = arith.mulf %83, %84 : vector<32xf32>
    %c7 = arith.constant 7 : index
    %c0_22 = arith.constant 0 : index
    %86 = vector.load %arg3[%c7, %c0_22] : memref<16x32xf32, #tpu.memory_space<vmem>>, vector<1x32xf32>
    %87 = vector.shape_cast %86 : vector<1x32xf32> to vector<32xf32>
    %88 = vector.shape_cast %85 : vector<32xf32> to vector<1x32xf32>
    tpu.vector_store %arg3[%c7, %c0_22], %88 {strides = array<i32>} : memref<16x32xf32, #tpu.memory_space<vmem>>, vector<1x32xf32>,
    %c8_i32 = arith.constant 8 : i32
    %89 = arith.addi %0, %c8_i32 : i32
    %90 = arith.index_cast %89 : i32 to index
    %91 = memref.load %arg1[%90] : memref<16xi32, #tpu.memory_space<smem>>
    %92 = arith.index_cast %91 : i32 to index
    %c0_23 = arith.constant 0 : index
    %93 = vector.load %arg2[%92, %c0_23] : memref<64x32xf32, #tpu.memory_space<vmem>>, vector<1x32xf32>
    %94 = vector.shape_cast %93 : vector<1x32xf32> to vector<32xf32>
    %cst_24 = arith.constant 5.65685415 : f32
    %95 = vector.broadcast %cst_24 : f32 to vector<32xf32>
    %96 = arith.mulf %94, %95 : vector<32xf32>
    %c8 = arith.constant 8 : index
    %c0_25 = arith.constant 0 : index
    %97 = vector.load %arg3[%c8, %c0_25] : memref<16x32xf32, #tpu.memory_space<vmem>>, vector<1x32xf32>
    %98 = vector.shape_cast %97 : vector<1x32xf32> to vector<32xf32>
    %99 = vector.shape_cast %96 : vector<32xf32> to vector<1x32xf32>
    tpu.vector_store %arg3[%c8, %c0_25], %99 {strides = array<i32>} : memref<16x32xf32, #tpu.memory_space<vmem>>, vector<1x32xf32>,
    %c9_i32 = arith.constant 9 : i32
    %100 = arith.addi %0, %c9_i32 : i32
    %101 = arith.index_cast %100 : i32 to index
    %102 = memref.load %arg1[%101] : memref<16xi32, #tpu.memory_space<smem>>
    %103 = arith.index_cast %102 : i32 to index
    %c0_26 = arith.constant 0 : index
    %104 = vector.load %arg2[%103, %c0_26] : memref<64x32xf32, #tpu.memory_space<vmem>>, vector<1x32xf32>
    %105 = vector.shape_cast %104 : vector<1x32xf32> to vector<32xf32>
    %cst_27 = arith.constant 5.65685415 : f32
    %106 = vector.broadcast %cst_27 : f32 to vector<32xf32>
    %107 = arith.mulf %105, %106 : vector<32xf32>
    %c9 = arith.constant 9 : index
    %c0_28 = arith.constant 0 : index
    %108 = vector.load %arg3[%c9, %c0_28] : memref<16x32xf32, #tpu.memory_space<vmem>>, vector<1x32xf32>
    %109 = vector.shape_cast %108 : vector<1x32xf32> to vector<32xf32>
    %110 = vector.shape_cast %107 : vector<32xf32> to vector<1x32xf32>
    tpu.vector_store %arg3[%c9, %c0_28], %110 {strides = array<i32>} : memref<16x32xf32, #tpu.memory_space<vmem>>, vector<1x32xf32>,
    %c10_i32 = arith.constant 10 : i32
    %111 = arith.addi %0, %c10_i32 : i32
    %112 = arith.index_cast %111 : i32 to index
    %113 = memref.load %arg1[%112] : memref<16xi32, #tpu.memory_space<smem>>
    %114 = arith.index_cast %113 : i32 to index
    %c0_29 = arith.constant 0 : index
    %115 = vector.load %arg2[%114, %c0_29] : memref<64x32xf32, #tpu.memory_space<vmem>>, vector<1x32xf32>
    %116 = vector.shape_cast %115 : vector<1x32xf32> to vector<32xf32>
    %cst_30 = arith.constant 5.65685415 : f32
    %117 = vector.broadcast %cst_30 : f32 to vector<32xf32>
    %118 = arith.mulf %116, %117 : vector<32xf32>
    %c10 = arith.constant 10 : index
    %c0_31 = arith.constant 0 : index
    %119 = vector.load %arg3[%c10, %c0_31] : memref<16x32xf32, #tpu.memory_space<vmem>>, vector<1x32xf32>
    %120 = vector.shape_cast %119 : vector<1x32xf32> to vector<32xf32>
    %121 = vector.shape_cast %118 : vector<32xf32> to vector<1x32xf32>
    tpu.vector_store %arg3[%c10, %c0_31], %121 {strides = array<i32>} : memref<16x32xf32, #tpu.memory_space<vmem>>, vector<1x32xf32>,
    %c11_i32 = arith.constant 11 : i32
    %122 = arith.addi %0, %c11_i32 : i32
    %123 = arith.index_cast %122 : i32 to index
    %124 = memref.load %arg1[%123] : memref<16xi32, #tpu.memory_space<smem>>
    %125 = arith.index_cast %124 : i32 to index
    %c0_32 = arith.constant 0 : index
    %126 = vector.load %arg2[%125, %c0_32] : memref<64x32xf32, #tpu.memory_space<vmem>>, vector<1x32xf32>
    %127 = vector.shape_cast %126 : vector<1x32xf32> to vector<32xf32>
    %cst_33 = arith.constant 5.65685415 : f32
    %128 = vector.broadcast %cst_33 : f32 to vector<32xf32>
    %129 = arith.mulf %127, %128 : vector<32xf32>
    %c11 = arith.constant 11 : index
    %c0_34 = arith.constant 0 : index
    %130 = vector.load %arg3[%c11, %c0_34] : memref<16x32xf32, #tpu.memory_space<vmem>>, vector<1x32xf32>
    %131 = vector.shape_cast %130 : vector<1x32xf32> to vector<32xf32>
    %132 = vector.shape_cast %129 : vector<32xf32> to vector<1x32xf32>
    tpu.vector_store %arg3[%c11, %c0_34], %132 {strides = array<i32>} : memref<16x32xf32, #tpu.memory_space<vmem>>, vector<1x32xf32>,
    %c12_i32 = arith.constant 12 : i32
    %133 = arith.addi %0, %c12_i32 : i32
    %134 = arith.index_cast %133 : i32 to index
    %135 = memref.load %arg1[%134] : memref<16xi32, #tpu.memory_space<smem>>
    %136 = arith.index_cast %135 : i32 to index
    %c0_35 = arith.constant 0 : index
    %137 = vector.load %arg2[%136, %c0_35] : memref<64x32xf32, #tpu.memory_space<vmem>>, vector<1x32xf32>
    %138 = vector.shape_cast %137 : vector<1x32xf32> to vector<32xf32>
    %cst_36 = arith.constant 5.65685415 : f32
    %139 = vector.broadcast %cst_36 : f32 to vector<32xf32>
    %140 = arith.mulf %138, %139 : vector<32xf32>
    %c12 = arith.constant 12 : index
    %c0_37 = arith.constant 0 : index
    %141 = vector.load %arg3[%c12, %c0_37] : memref<16x32xf32, #tpu.memory_space<vmem>>, vector<1x32xf32>
    %142 = vector.shape_cast %141 : vector<1x32xf32> to vector<32xf32>
    %143 = vector.shape_cast %140 : vector<32xf32> to vector<1x32xf32>
    tpu.vector_store %arg3[%c12, %c0_37], %143 {strides = array<i32>} : memref<16x32xf32, #tpu.memory_space<vmem>>, vector<1x32xf32>,
    %c13_i32 = arith.constant 13 : i32
    %144 = arith.addi %0, %c13_i32 : i32
    %145 = arith.index_cast %144 : i32 to index
    %146 = memref.load %arg1[%145] : memref<16xi32, #tpu.memory_space<smem>>
    %147 = arith.index_cast %146 : i32 to index
    %c0_38 = arith.constant 0 : index
    %148 = vector.load %arg2[%147, %c0_38] : memref<64x32xf32, #tpu.memory_space<vmem>>, vector<1x32xf32>
    %149 = vector.shape_cast %148 : vector<1x32xf32> to vector<32xf32>
    %cst_39 = arith.constant 5.65685415 : f32
    %150 = vector.broadcast %cst_39 : f32 to vector<32xf32>
    %151 = arith.mulf %149, %150 : vector<32xf32>
    %c13 = arith.constant 13 : index
    %c0_40 = arith.constant 0 : index
    %152 = vector.load %arg3[%c13, %c0_40] : memref<16x32xf32, #tpu.memory_space<vmem>>, vector<1x32xf32>
    %153 = vector.shape_cast %152 : vector<1x32xf32> to vector<32xf32>
    %154 = vector.shape_cast %151 : vector<32xf32> to vector<1x32xf32>
    tpu.vector_store %arg3[%c13, %c0_40], %154 {strides = array<i32>} : memref<16x32xf32, #tpu.memory_space<vmem>>, vector<1x32xf32>,
    %c14_i32 = arith.constant 14 : i32
    %155 = arith.addi %0, %c14_i32 : i32
    %156 = arith.index_cast %155 : i32 to index
    %157 = memref.load %arg1[%156] : memref<16xi32, #tpu.memory_space<smem>>
    %158 = arith.index_cast %157 : i32 to index
    %c0_41 = arith.constant 0 : index
    %159 = vector.load %arg2[%158, %c0_41] : memref<64x32xf32, #tpu.memory_space<vmem>>, vector<1x32xf32>
    %160 = vector.shape_cast %159 : vector<1x32xf32> to vector<32xf32>
    %cst_42 = arith.constant 5.65685415 : f32
    %161 = vector.broadcast %cst_42 : f32 to vector<32xf32>
    %162 = arith.mulf %160, %161 : vector<32xf32>
    %c14 = arith.constant 14 : index
    %c0_43 = arith.constant 0 : index
    %163 = vector.load %arg3[%c14, %c0_43] : memref<16x32xf32, #tpu.memory_space<vmem>>, vector<1x32xf32>
    %164 = vector.shape_cast %163 : vector<1x32xf32> to vector<32xf32>
    %165 = vector.shape_cast %162 : vector<32xf32> to vector<1x32xf32>
    tpu.vector_store %arg3[%c14, %c0_43], %165 {strides = array<i32>} : memref<16x32xf32, #tpu.memory_space<vmem>>, vector<1x32xf32>,
    %c15_i32 = arith.constant 15 : i32
    %166 = arith.addi %0, %c15_i32 : i32
    %167 = arith.index_cast %166 : i32 to index
    %168 = memref.load %arg1[%167] : memref<16xi32, #tpu.memory_space<smem>>
    %169 = arith.index_cast %168 : i32 to index
    %c0_44 = arith.constant 0 : index
    %170 = vector.load %arg2[%169, %c0_44] : memref<64x32xf32, #tpu.memory_space<vmem>>, vector<1x32xf32>
    %171 = vector.shape_cast %170 : vector<1x32xf32> to vector<32xf32>
    %cst_45 = arith.constant 5.65685415 : f32
    %172 = vector.broadcast %cst_45 : f32 to vector<32xf32>
    %173 = arith.mulf %171, %172 : vector<32xf32>
    %c15 = arith.constant 15 : index
    %c0_46 = arith.constant 0 : index
    %174 = vector.load %arg3[%c15, %c0_46] : memref<16x32xf32, #tpu.memory_space<vmem>>, vector<1x32xf32>
    %175 = vector.shape_cast %174 : vector<1x32xf32> to vector<32xf32>
    %176 = vector.shape_cast %173 : vector<32xf32> to vector<1x32xf32>
    tpu.vector_store %arg3[%c15, %c0_46], %176 {strides = array<i32>} : memref<16x32xf32, #tpu.memory_space<vmem>>, vector<1x32xf32>,
    return
  }
  func.func @transform_0(%arg0: i32, %arg1: memref<16xi32, #tpu.memory_space<smem>>) -> (i32, i32) {
    %c0_i32 = arith.constant 0 : i32
    %c0_i32_0 = arith.constant 0 : i32
    %c0_i32_1 = arith.constant 0 : i32
    return %c0_i32, %c0_i32_0 : i32, i32
  }
  func.func @transform_1(%arg0: i32, %arg1: memref<16xi32, #tpu.memory_space<smem>>) -> (i32, i32) {
    %c0_i32 = arith.constant 0 : i32
    %c0_i32_0 = arith.constant 0 : i32
    return %arg0, %c0_i32 : i32, i32
  }
}

</mosaic_0001>

<llo_original>
// kernel: tpu_custom_call.1
$region0: #{tpu_custom_call.1}
  #allocation0 [shape = 'u32[]', space=smem, size = 0x4, offset = 0x4, fixed_abs, tag = 'smem constant byte address 0x4 - core index']
  #allocation1 [shape = 'u32[144,128]{1,0:T(1,128)}', space=vmem, size = 0x12000, scoped, tag = 'internal scratch']
  #allocation2 [shape = 's32[1]{0}', space=sflag, size = 0x4, scoped, tag = 'scoped memory for tpu_custom_call.1']
  #allocation3 [shape = 'u8[512]{0}', space=smem, size = 0x200, scoped, tag = 'prefetched SMEM operand 0']
  %s0 = inlined_call_operand.vmem [shape: s32[16], index: 0, kind: input, shape index: {}]
  %s1 = inlined_call_operand.vmem [shape: f32[64,32], index: 1, kind: input, shape index: {}]
  %s2 = inlined_call_operand.hbm [shape: f32[16,32], index: 2, kind: output, shape index: {}]
  %s3 = sld [smem:[#allocation0]]
  $region14: #{tpu_custom_call.1} parent=0
    _
  %s5 = ssub.s32 1, %s3
  %s6 = scalar_select 0, %s5, %s3
  %s7 = sshll.u32 %s0, 4
  %s8 = int_to_ptr.vmem [resolvable:$true] %s7
  %10 = dma.vmem_to_smem %s8, 16, [#allocation3], [#allocation2]
  %11 = dma.done [#allocation2], 16
  %12 = sfence
  $region1: #{tpu_custom_call.1} parent=0
    #allocation4 [shape = 'u8[8192]{0}', space=vmem, size = 0x2000, scoped, tag = 'output window, operand 0, single buffered']
    #allocation5 [shape = 's32[1]{0}', space=sflag, size = 0x4, scoped, tag = 'scoped memory for tpu_custom_call.1']
    %13 = vsyncpa [#allocation5], 0
    // Predicated region
    $region2: #{tpu_custom_call.1} parent=1 // pred_check
      _
    $region3: #{tpu_custom_call.1} parent=1 // pred_check_branch
      %15 = sbr.rel (0) target = $region5
    $region4: #{tpu_custom_call.1} parent=1 // pred_region
      _
    $region5: #{tpu_custom_call.1} parent=1 // pred_fallthru
      _
    %s16 = smul.u32 0, 16
    %s17 = sld [smem:[#allocation3 + %s16]]
    %s18 = scalar_lea.vmem %s1, %s17
    %v19 = vld [vmem:[%s18] sm:$0x1]
    %v20 = vmul.f32 %v19, 5.656854
    %vm21 = vcmask 253952
    %22 = vst.msk [vmem:[#allocation4] sm:$0x1] %vm21, %v20
    %s23 = sadd.s32 %s16, 1
    %s24 = sld [smem:[#allocation3 + %s23]]
    %s25 = scalar_lea.vmem %s1, %s24
    %v26 = vld [vmem:[%s25] sm:$0x1]
    %v27 = vmul.f32 %v26, 5.656854
    %28 = vst.msk [vmem:[#allocation4 + $0x1] sm:$0x1] %vm21, %v27
    %s29 = sadd.s32 %s16, 2
    %s30 = sld [smem:[#allocation3 + %s29]]
    %s31 = scalar_lea.vmem %s1, %s30
    %v32 = vld [vmem:[%s31] sm:$0x1]
    %v33 = vmul.f32 %v32, 5.656854
    %34 = vst.msk [vmem:[#allocation4 + $0x2] sm:$0x1] %vm21, %v33
    %s35 = sadd.s32 %s16, 3
    %s36 = sld [smem:[#allocation3 + %s35]]
    %s37 = scalar_lea.vmem %s1, %s36
    %v38 = vld [vmem:[%s37] sm:$0x1]
    %v39 = vmul.f32 %v38, 5.656854
    %40 = vst.msk [vmem:[#allocation4 + $0x3] sm:$0x1] %vm21, %v39
    %s41 = sadd.s32 %s16, 4
    %s42 = sld [smem:[#allocation3 + %s41]]
    %s43 = scalar_lea.vmem %s1, %s42
    %v44 = vld [vmem:[%s43] sm:$0x1]
    %v45 = vmul.f32 %v44, 5.656854
    %46 = vst.msk [vmem:[#allocation4 + $0x4] sm:$0x1] %vm21, %v45
    %s47 = sadd.s32 %s16, 5
    %s48 = sld [smem:[#allocation3 + %s47]]
    %s49 = scalar_lea.vmem %s1, %s48
    %v50 = vld [vmem:[%s49] sm:$0x1]
    %v51 = vmul.f32 %v50, 5.656854
    %52 = vst.msk [vmem:[#allocation4 + $0x5] sm:$0x1] %vm21, %v51
    %s53 = sadd.s32 %s16, 6
    %s54 = sld [smem:[#allocation3 + %s53]]
    %s55 = scalar_lea.vmem %s1, %s54
    %v56 = vld [vmem:[%s55] sm:$0x1]
    %v57 = vmul.f32 %v56, 5.656854
    %58 = vst.msk [vmem:[#allocation4 + $0x6] sm:$0x1] %vm21, %v57
    %s59 = sadd.s32 %s16, 7
    %s60 = sld [smem:[#allocation3 + %s59]]
    %s61 = scalar_lea.vmem %s1, %s60
    %v62 = vld [vmem:[%s61] sm:$0x1]
    %v63 = vmul.f32 %v62, 5.656854
    %64 = vst.msk [vmem:[#allocation4 + $0x7] sm:$0x1] %vm21, %v63
    %s65 = sadd.s32 %s16, 8
    %s66 = sld [smem:[#allocation3 + %s65]]
    %s67 = scalar_lea.vmem %s1, %s66
    %v68 = vld [vmem:[%s67] sm:$0x1]
    %v69 = vmul.f32 %v68, 5.656854
    %70 = vst.msk [vmem:[#allocation4 + $0x8] sm:$0x1] %vm21, %v69
    %s71 = sadd.s32 %s16, 9
    %s72 = sld [smem:[#allocation3 + %s71]]
    %s73 = scalar_lea.vmem %s1, %s72
    %v74 = vld [vmem:[%s73] sm:$0x1]
    %v75 = vmul.f32 %v74, 5.656854
    %76 = vst.msk [vmem:[#allocation4 + $0x9] sm:$0x1] %vm21, %v75
    %s77 = sadd.s32 %s16, 10
    %s78 = sld [smem:[#allocation3 + %s77]]
    %s79 = scalar_lea.vmem %s1, %s78
    %v80 = vld [vmem:[%s79] sm:$0x1]
    %v81 = vmul.f32 %v80, 5.656854
    %82 = vst.msk [vmem:[#allocation4 + $0xa] sm:$0x1] %vm21, %v81
    %s83 = sadd.s32 %s16, 11
    %s84 = sld [smem:[#allocation3 + %s83]]
    %s85 = scalar_lea.vmem %s1, %s84
    %v86 = vld [vmem:[%s85] sm:$0x1]
    %v87 = vmul.f32 %v86, 5.656854
    %88 = vst.msk [vmem:[#allocation4 + $0xb] sm:$0x1] %vm21, %v87
    %s89 = sadd.s32 %s16, 12
    %s90 = sld [smem:[#allocation3 + %s89]]
    %s91 = scalar_lea.vmem %s1, %s90
    %v92 = vld [vmem:[%s91] sm:$0x1]
    %v93 = vmul.f32 %v92, 5.656854
    %94 = vst.msk [vmem:[#allocation4 + $0xc] sm:$0x1] %vm21, %v93
    %s95 = sadd.s32 %s16, 13
    %s96 = sld [smem:[#allocation3 + %s95]]
    %s97 = scalar_lea.vmem %s1, %s96
    %v98 = vld [vmem:[%s97] sm:$0x1]
    %v99 = vmul.f32 %v98, 5.656854
    %100 = vst.msk [vmem:[#allocation4 + $0xd] sm:$0x1] %vm21, %v99
    %s101 = sadd.s32 %s16, 14
    %s102 = sld [smem:[#allocation3 + %s101]]
    %s103 = scalar_lea.vmem %s1, %s102
    %v104 = vld [vmem:[%s103] sm:$0x1]
    %v105 = vmul.f32 %v104, 5.656854
    %106 = vst.msk [vmem:[#allocation4 + $0xe] sm:$0x1] %vm21, %v105
    %s107 = sadd.s32 %s16, 15
    %s108 = sld [smem:[#allocation3 + %s107]]
    %s109 = scalar_lea.vmem %s1, %s108
    %v110 = vld [vmem:[%s109] sm:$0x1]
    %v111 = vmul.f32 %v110, 5.656854
    %112 = vst.msk [vmem:[#allocation4 + $0xf] sm:$0x1] %vm21, %v111
    // Predicated region
    $region6: #{tpu_custom_call.1} parent=1 // pred_check
      _
    $region7: #{tpu_custom_call.1} parent=1 // pred_check_branch
      %114 = sbr.rel (0) target = $region9
    $region8: #{tpu_custom_call.1} parent=1 // pred_region
      %s116 = ssub.s32 256, 256
      %117 = vsyncadd [#allocation5], %s116
      %s118 = sshll.u32 [#allocation4], 4
      %s119 = int_to_ptr.vmem [resolvable:$true] %s118
      %124 = dma.vmem_to_hbm [thread:$0]  %s119, 256, %s2, [#allocation5], 128, 128, 8
    $region9: #{tpu_custom_call.1} parent=1 // pred_fallthru
      _
    // Predicated region
    $region10: #{tpu_custom_call.1} parent=1 // pred_check
      _
    $region11: #{tpu_custom_call.1} parent=1 // pred_check_branch
      %126 = sbr.rel (0) target = $region13
    $region12: #{tpu_custom_call.1} parent=1 // pred_region
      %127 = dma.done [#allocation5], 256
    $region13: #{tpu_custom_call.1} parent=1 // pred_fallthru
      _
    %128 = vsyncpa [#allocation5], 1

</llo_original>
